<compile_context>
chip_gen: v7x
topology: tpu7x:2x2x1
jax: 0.10.0
libtpu: 0.0.40
codegen_flags: <defaults>
</compile_context>

<pallas_src>
import jax
import jax.numpy as jnp
from jax.experimental import pallas as pl
from jax.experimental.pallas import tpu as pltpu


def fc_model_kernel(x_ref, w1t_ref, b1_ref, w2t_ref, b2_ref, o_ref):
    # x_ref  : (B, in_dim)          f32
    # w1t_ref: (in_dim, hidden)     f32   (pre-transposed PyTorch Linear weight)
    # b1_ref : (1, hidden)          f32
    # w2t_ref: (hidden, out_pad)    f32   (pre-transposed, zero-padded to 128-mult)
    # b2_ref : (1, out_pad)         f32   (zero-padded)
    # o_ref  : (B, out_pad)         f32   (lane-dense output block)
    x = x_ref[...]
    # fc1: x @ W1.T + b1  (W1.T pre-materialized -> plain MXU matmul)
    h = jnp.dot(x, w1t_ref[...], preferred_element_type=jnp.float32) + b1_ref[...]
    # fc2: h @ W2.T + b2  (padded columns are zero -> harmless extra lanes)
    y = jnp.dot(h, w2t_ref[...], preferred_element_type=jnp.float32) + b2_ref[...]
    o_ref[...] = y.astype(o_ref.dtype)


def prepare_params(w1, b1, w2, b2):
    """One-time parameter preprocessing (model-init time, NOT per forward).

    w1: (hidden, in_dim), b1: (hidden,)   -- PyTorch Linear layout
    w2: (out_dim, hidden), b2: (out_dim,)
    Returns a dict of device arrays in kernel-ready layout plus static dims.
    """
    hidden, in_dim = w1.shape
    out_dim = w2.shape[0]
    # Pad the output width to the next multiple of 128 lanes (lane-dense store).
    out_pad = max(128, ((out_dim + 127) // 128) * 128)

    w1_t = jnp.asarray(w1, jnp.float32).T                      # (in_dim, hidden)
    b1_2d = jnp.asarray(b1, jnp.float32).reshape(1, hidden)    # (1, hidden)

    w2_t = jnp.asarray(w2, jnp.float32).T                      # (hidden, out_dim)
    w2_t_pad = jnp.zeros((hidden, out_pad), jnp.float32).at[:, :out_dim].set(w2_t)
    b2_pad = jnp.zeros((1, out_pad), jnp.float32).at[0, :out_dim].set(
        jnp.asarray(b2, jnp.float32))

    return {
        "w1_t": w1_t, "b1": b1_2d, "w2_t": w2_t_pad, "b2": b2_pad,
        "in_dim": in_dim, "hidden": hidden,
        "out_dim": out_dim, "out_pad": out_pad,
    }


def fc_model_forward(x_nchw, params):
    """Pallas implementation of FCModel.forward.

    x_nchw: (B, C, H, W) float32 (C*H*W must equal params['in_dim'])
    params: output of prepare_params()
    returns: (B, out_dim) float32
    """
    B = x_nchw.shape[0]
    in_dim = params["in_dim"]
    hidden = params["hidden"]
    out_dim = params["out_dim"]
    out_pad = params["out_pad"]

    # Same row-major flatten as torch.reshape(x, (B, -1)). No per-call casts.
    x2d = jnp.reshape(x_nchw, (B, in_dim))

    flops = 2 * B * (in_dim * hidden + hidden * out_pad)
    bytes_accessed = 4 * (
        B * in_dim                 # x
        + in_dim * hidden + hidden # fc1 params
        + hidden * out_pad + out_pad  # fc2 params (padded)
        + B * out_pad              # output
    )

    vmem_spec = pl.BlockSpec(memory_space=pltpu.MemorySpace.VMEM)
    out_padded = pl.pallas_call(
        fc_model_kernel,
        out_shape=jax.ShapeDtypeStruct((B, out_pad), jnp.float32),
        in_specs=[vmem_spec] * 5,
        out_specs=vmem_spec,
        cost_estimate=pl.CostEstimate(
            flops=flops, transcendentals=0, bytes_accessed=bytes_accessed),
    )(x2d, params["w1_t"], params["b1"], params["w2_t"], params["b2"])

    # Drop the zero-padded lanes (cheap XLA slice; padded cols are exact zeros).
    return out_padded[:, :out_dim]


if __name__ == "__main__":
    # Small, MNIST-flavored shapes: B=8, single channel, 16x16 spatial.
    B, C, H, W = 8, 1, 16, 16
    in_dim = C * H * W          # 256
    hidden_dim = 128
    out_dim = 10

    key = jax.random.PRNGKey(0)
    kx, k1, k2, k3, k4 = jax.random.split(key, 5)

    x = jax.random.normal(kx, (B, C, H, W), dtype=jnp.float32)

    # Deterministic parameter init (PyTorch Linear-style uniform bounds).
    bound1 = 1.0 / (in_dim ** 0.5)
    w1 = jax.random.uniform(k1, (hidden_dim, in_dim), jnp.float32, -bound1, bound1)
    b1 = jax.random.uniform(k2, (hidden_dim,), jnp.float32, -bound1, bound1)
    bound2 = 1.0 / (hidden_dim ** 0.5)
    w2 = jax.random.uniform(k3, (out_dim, hidden_dim), jnp.float32, -bound2, bound2)
    b2 = jax.random.uniform(k4, (out_dim,), jnp.float32, -bound2, bound2)

    # One-time param prep (transposes / padding / reshapes hoisted out of the
    # per-forward hot path).
    params = prepare_params(w1, b1, w2, b2)

    out = fc_model_forward(x, params)
    out = jax.block_until_ready(out)

    # Reference check in plain JAX (same math as the PyTorch module).
    ref = jnp.reshape(x, (B, -1)) @ w1.T + b1
    ref = ref @ w2.T + b2
    assert out.shape == (B, out_dim)
    assert jnp.allclose(out, ref, atol=1e-4, rtol=1e-4)

    print("KERNEL_OK")
</pallas_src>

<mosaic_0001>
module attributes {stable_mosaic.version = 11 : i64} {
  func.func @fc_model_kernel(%arg0: memref<8x256xf32, #tpu.memory_space<vmem>>, %arg1: memref<256x128xf32, #tpu.memory_space<vmem>>, %arg2: memref<1x128xf32, #tpu.memory_space<vmem>>, %arg3: memref<128x128xf32, #tpu.memory_space<vmem>>, %arg4: memref<1x128xf32, #tpu.memory_space<vmem>>, %arg5: memref<8x128xf32, #tpu.memory_space<vmem>>) attributes {dimension_semantics = [], scalar_prefetch = 0 : i64, scratch_operands = 0 : i64, tpu.core_type = #tpu.core_type<tc>} {
    %c0 = arith.constant 0 : index
    %c0_0 = arith.constant 0 : index
    %0 = vector.load %arg0[%c0, %c0_0] : memref<8x256xf32, #tpu.memory_space<vmem>>, vector<8x256xf32>
    %c0_1 = arith.constant 0 : index
    %c0_2 = arith.constant 0 : index
    %1 = vector.load %arg1[%c0_1, %c0_2] : memref<256x128xf32, #tpu.memory_space<vmem>>, vector<256x128xf32>
    %cst = arith.constant dense<0.000000e+00> : vector<8x128xf32>
    %2 = tpu.matmul %0, %1, %cst {dimension_numbers = #tpu.dot_dimension_numbers<[1], [0], [0], [1], [0, 0, 1, 1], [], []>} : vector<8x256xf32>, vector<256x128xf32>, vector<8x128xf32> -> vector<8x128xf32>
    %c0_3 = arith.constant 0 : index
    %c0_4 = arith.constant 0 : index
    %3 = vector.load %arg2[%c0_3, %c0_4] : memref<1x128xf32, #tpu.memory_space<vmem>>, vector<1x128xf32>
    %4 = vector.broadcast %3 : vector<1x128xf32> to vector<8x128xf32>
    %5 = arith.addf %2, %4 : vector<8x128xf32>
    %c0_5 = arith.constant 0 : index
    %c0_6 = arith.constant 0 : index
    %6 = vector.load %arg3[%c0_5, %c0_6] : memref<128x128xf32, #tpu.memory_space<vmem>>, vector<128x128xf32>
    %cst_7 = arith.constant dense<0.000000e+00> : vector<8x128xf32>
    %7 = tpu.matmul %5, %6, %cst_7 {dimension_numbers = #tpu.dot_dimension_numbers<[1], [0], [0], [1], [0, 0, 1, 1], [], []>} : vector<8x128xf32>, vector<128x128xf32>, vector<8x128xf32> -> vector<8x128xf32>
    %c0_8 = arith.constant 0 : index
    %c0_9 = arith.constant 0 : index
    %8 = vector.load %arg4[%c0_8, %c0_9] : memref<1x128xf32, #tpu.memory_space<vmem>>, vector<1x128xf32>
    %9 = vector.broadcast %8 : vector<1x128xf32> to vector<8x128xf32>
    %10 = arith.addf %7, %9 : vector<8x128xf32>
    %c0_10 = arith.constant 0 : index
    %c0_11 = arith.constant 0 : index
    %11 = vector.load %arg5[%c0_10, %c0_11] : memref<8x128xf32, #tpu.memory_space<vmem>>, vector<8x128xf32>
    tpu.vector_store %arg5[%c0_10, %c0_11], %10 {strides = array<i32>} : memref<8x128xf32, #tpu.memory_space<vmem>>, vector<8x128xf32>,
    return
  }
}

</mosaic_0001>

<llo_original>
// kernel: tpu_custom_call.1
$region0: #{tpu_custom_call.1}
  #allocation0 [shape = 'u32[]', space=smem, size = 0x4, offset = 0x4, fixed_abs, tag = 'smem constant byte address 0x4 - core index']
  #allocation1 [shape = 'u32[144,128]{1,0:T(1,128)}', space=vmem, size = 0x12000, scoped, tag = 'internal scratch']
  %s0 = inlined_call_operand.hbm [shape: f32[8,256], index: 0, kind: input, shape index: {}]
  %s1 = inlined_call_operand.hbm [shape: f32[256,128], index: 1, kind: input, shape index: {}]
  %s2 = inlined_call_operand.vmem [shape: f32[1,128], index: 2, kind: input, shape index: {}]
  %s3 = inlined_call_operand.hbm [shape: f32[128,128], index: 3, kind: input, shape index: {}]
  %s4 = inlined_call_operand.vmem [shape: f32[1,128], index: 4, kind: input, shape index: {}]
  %s5 = inlined_call_operand.hbm [shape: f32[8,128], index: 5, kind: output, shape index: {}]
  %s6 = sld [smem:[#allocation0]]
  $region42: #{tpu_custom_call.1} parent=0
    _
  %s8 = ssub.s32 1, %s6
  %s9 = scalar_select 0, %s8, %s6
  $region1: #{tpu_custom_call.1} parent=0
    #allocation2 [shape = 'u8[8192]{0}', space=vmem, size = 0x2000, scoped, tag = 'input window, operand 0, single buffered']
    #allocation3 [shape = 's32[1]{0}', space=sflag, size = 0x4, scoped, tag = 'scoped memory for tpu_custom_call.1']
    #allocation4 [shape = 's32[1]{0}', space=sflag, size = 0x4, scoped, tag = 'scoped memory for tpu_custom_call.1']
    #allocation5 [shape = 'u8[131072]{0}', space=vmem, size = 0x20000, scoped, tag = 'input window, operand 1, single buffered']
    #allocation6 [shape = 's32[1]{0}', space=sflag, size = 0x4, scoped, tag = 'scoped memory for tpu_custom_call.1']
    #allocation7 [shape = 'u8[65536]{0}', space=vmem, size = 0x10000, scoped, tag = 'input window, operand 3, single buffered']
    #allocation8 [shape = 'u8[4096]{0}', space=vmem, size = 0x1000, scoped, tag = 'output window, operand 0, single buffered']
    %10 = vsyncpa [#allocation3], 0
    %11 = vsyncpa [#allocation6], 0
    %12 = vsyncpa [#allocation4], 0
    // Predicated region
    $region2: #{tpu_custom_call.1} parent=1 // pred_check
      _
    $region3: #{tpu_custom_call.1} parent=1 // pred_check_branch
      %14 = sbr.rel (0) target = $region5
    $region4: #{tpu_custom_call.1} parent=1 // pred_region
      %s16 = ssub.s32 256, 256
      %17 = vsyncadd [#allocation3], %s16
      %s19 = sshll.u32 [#allocation2], 4
      %s20 = int_to_ptr.vmem [resolvable:$true] %s19
      %22 = dma.hbm_to_vmem [thread:$0]  %s0, 256, %s20, [#allocation3]
    $region5: #{tpu_custom_call.1} parent=1 // pred_fallthru
      _
    // Predicated region
    $region6: #{tpu_custom_call.1} parent=1 // pred_check
      _
    $region7: #{tpu_custom_call.1} parent=1 // pred_check_branch
      %24 = sbr.rel (0) target = $region9
    $region8: #{tpu_custom_call.1} parent=1 // pred_region
      %s26 = ssub.s32 4096, 4096
      %27 = vsyncadd [#allocation6], %s26
      %s28 = sshll.u32 [#allocation5], 4
      %s29 = int_to_ptr.vmem [resolvable:$true] %s28
      %34 = dma.hbm_to_vmem [thread:$0]  %s1, 4096, %s29, [#allocation6], 128, 128, 8
    $region9: #{tpu_custom_call.1} parent=1 // pred_fallthru
      _
    // Predicated region
    $region10: #{tpu_custom_call.1} parent=1 // pred_check
      _
    $region11: #{tpu_custom_call.1} parent=1 // pred_check_branch
      %36 = sbr.rel (0) target = $region13
    $region12: #{tpu_custom_call.1} parent=1 // pred_region
      _
    $region13: #{tpu_custom_call.1} parent=1 // pred_fallthru
      _
    // Predicated region
    $region14: #{tpu_custom_call.1} parent=1 // pred_check
      _
    $region15: #{tpu_custom_call.1} parent=1 // pred_check_branch
      %38 = sbr.rel (0) target = $region17
    $region16: #{tpu_custom_call.1} parent=1 // pred_region
      %s40 = ssub.s32 2048, 2048
      %41 = vsyncadd [#allocation6], %s40
      %s42 = sshll.u32 [#allocation7], 4
      %s43 = int_to_ptr.vmem [resolvable:$true] %s42
      %48 = dma.hbm_to_vmem [thread:$0]  %s3, 2048, %s43, [#allocation6], 128, 128, 8
    $region17: #{tpu_custom_call.1} parent=1 // pred_fallthru
      _
    // Predicated region
    $region18: #{tpu_custom_call.1} parent=1 // pred_check
      _
    $region19: #{tpu_custom_call.1} parent=1 // pred_check_branch
      %50 = sbr.rel (0) target = $region21
    $region20: #{tpu_custom_call.1} parent=1 // pred_region
      _
    $region21: #{tpu_custom_call.1} parent=1 // pred_fallthru
      _
    // Predicated region
    $region22: #{tpu_custom_call.1} parent=1 // pred_check
      _
    $region23: #{tpu_custom_call.1} parent=1 // pred_check_branch
      %52 = sbr.rel (0) target = $region25
    $region24: #{tpu_custom_call.1} parent=1 // pred_region
      %53 = dma.done [#allocation3], 256
    $region25: #{tpu_custom_call.1} parent=1 // pred_fallthru
      _
    // Predicated region
    $region26: #{tpu_custom_call.1} parent=1 // pred_check
      _
    $region27: #{tpu_custom_call.1} parent=1 // pred_check_branch
      %55 = sbr.rel (0) target = $region29
    $region28: #{tpu_custom_call.1} parent=1 // pred_region
      %56 = dma.done [#allocation6], 4096
    $region29: #{tpu_custom_call.1} parent=1 // pred_fallthru
      _
    // Predicated region
    $region30: #{tpu_custom_call.1} parent=1 // pred_check
      _
    $region31: #{tpu_custom_call.1} parent=1 // pred_check_branch
      %58 = sbr.rel (0) target = $region33
    $region32: #{tpu_custom_call.1} parent=1 // pred_region
      %59 = dma.done [#allocation6], 2048
    $region33: #{tpu_custom_call.1} parent=1 // pred_fallthru
      _
    %v60 = vld [vmem:[#allocation2] sm:$0xff]
    %v61 = vld [vmem:[#allocation2 + $0x8] sm:$0xff]
    %v62 = vld [vmem:[#allocation5] sm:$0xff]
    %v63 = vld [vmem:[#allocation5 + $0x8] sm:$0xff]
    %v64 = vld [vmem:[#allocation5 + $0x10] sm:$0xff]
    %v65 = vld [vmem:[#allocation5 + $0x18] sm:$0xff]
    %v66 = vld [vmem:[#allocation5 + $0x20] sm:$0xff]
    %v67 = vld [vmem:[#allocation5 + $0x28] sm:$0xff]
    %v68 = vld [vmem:[#allocation5 + $0x30] sm:$0xff]
    %v69 = vld [vmem:[#allocation5 + $0x38] sm:$0xff]
    %v70 = vld [vmem:[#allocation5 + $0x40] sm:$0xff]
    %v71 = vld [vmem:[#allocation5 + $0x48] sm:$0xff]
    %v72 = vld [vmem:[#allocation5 + $0x50] sm:$0xff]
    %v73 = vld [vmem:[#allocation5 + $0x58] sm:$0xff]
    %v74 = vld [vmem:[#allocation5 + $0x60] sm:$0xff]
    %v75 = vld [vmem:[#allocation5 + $0x68] sm:$0xff]
    %v76 = vld [vmem:[#allocation5 + $0x70] sm:$0xff]
    %v77 = vld [vmem:[#allocation5 + $0x78] sm:$0xff]
    %v78 = vld [vmem:[#allocation5 + $0x80] sm:$0xff]
    %v79 = vld [vmem:[#allocation5 + $0x88] sm:$0xff]
    %v80 = vld [vmem:[#allocation5 + $0x90] sm:$0xff]
    %v81 = vld [vmem:[#allocation5 + $0x98] sm:$0xff]
    %v82 = vld [vmem:[#allocation5 + $0xa0] sm:$0xff]
    %v83 = vld [vmem:[#allocation5 + $0xa8] sm:$0xff]
    %v84 = vld [vmem:[#allocation5 + $0xb0] sm:$0xff]
    %v85 = vld [vmem:[#allocation5 + $0xb8] sm:$0xff]
    %v86 = vld [vmem:[#allocation5 + $0xc0] sm:$0xff]
    %v87 = vld [vmem:[#allocation5 + $0xc8] sm:$0xff]
    %v88 = vld [vmem:[#allocation5 + $0xd0] sm:$0xff]
    %v89 = vld [vmem:[#allocation5 + $0xd8] sm:$0xff]
    %v90 = vld [vmem:[#allocation5 + $0xe0] sm:$0xff]
    %v91 = vld [vmem:[#allocation5 + $0xe8] sm:$0xff]
    %v92 = vld [vmem:[#allocation5 + $0xf0] sm:$0xff]
    %v93 = vld [vmem:[#allocation5 + $0xf8] sm:$0xff]
    %v94 = vld [vmem:[%s2] sm:$0x1]
    %v96 = vlaneseq
    %v97 = vshrl.u32 %v96, 7
    %v98 = vsub.s32 0, %v97
    %v99 = vrot.slane %v94, %v98
    %101 = vmatprep.subr.mxu0 0.0
    %102 = vmatpush1.msra.mxu0 %v62
    %103 = vmatprep.subr.mxu0 0.0
    %104 = vmatpush1.msra.mxu0 %v63
    %105 = vmatprep.subr.mxu0 0.0
    %106 = vmatpush1.msra.mxu0 %v64
    %107 = vmatprep.subr.mxu0 0.0
    %108 = vmatpush1.msra.mxu0 %v65
    %109 = vmatprep.subr.mxu0 0.0
    %110 = vmatpush1.msra.mxu0 %v66
    %111 = vmatprep.subr.mxu0 0.0
    %112 = vmatpush1.msra.mxu0 %v67
    %113 = vmatprep.subr.mxu0 0.0
    %114 = vmatpush1.msra.mxu0 %v68
    %115 = vmatprep.subr.mxu0 0.0
    %116 = vmatpush1.msra.mxu0 %v69
    %117 = vmatprep.subr.mxu0 0.0
    %118 = vmatpush1.msra.mxu0 %v70
    %119 = vmatprep.subr.mxu0 0.0
    %120 = vmatpush1.msra.mxu0 %v71
    %121 = vmatprep.subr.mxu0 0.0
    %122 = vmatpush1.msra.mxu0 %v72
    %123 = vmatprep.subr.mxu0 0.0
    %124 = vmatpush1.msra.mxu0 %v73
    %125 = vmatprep.subr.mxu0 0.0
    %126 = vmatpush1.msra.mxu0 %v74
    %127 = vmatprep.subr.mxu0 0.0
    %128 = vmatpush1.msra.mxu0 %v75
    %129 = vmatprep.subr.mxu0 0.0
    %130 = vmatpush1.msra.mxu0 %v76
    %131 = vmatprep.subr.mxu0 0.0
    %132 = vmatpush1.msra.mxu0 %v77
    %133 = vmatprep.subr.mxu0 0.0
    %134 = vmatpush1.msra.mxu0 %v78
    %135 = vmatprep.subr.mxu0 0.0
    %136 = vmatpush1.msra.mxu0 %v79
    %137 = vmatprep.subr.mxu0 0.0
    %138 = vmatpush1.msra.mxu0 %v80
    %139 = vmatprep.subr.mxu0 0.0
    %140 = vmatpush1.msra.mxu0 %v81
    %141 = vmatprep.subr.mxu0 0.0
    %142 = vmatpush1.msra.mxu0 %v82
    %143 = vmatprep.subr.mxu0 0.0
    %144 = vmatpush1.msra.mxu0 %v83
    %145 = vmatprep.subr.mxu0 0.0
    %146 = vmatpush1.msra.mxu0 %v84
    %147 = vmatprep.subr.mxu0 0.0
    %148 = vmatpush1.msra.mxu0 %v85
    %149 = vmatprep.subr.mxu0 0.0
    %150 = vmatpush1.msra.mxu0 %v86
    %151 = vmatprep.subr.mxu0 0.0
    %152 = vmatpush1.msra.mxu0 %v87
    %153 = vmatprep.subr.mxu0 0.0
    %154 = vmatpush1.msra.mxu0 %v88
    %155 = vmatprep.subr.mxu0 0.0
    %156 = vmatpush1.msra.mxu0 %v89
    %157 = vmatprep.subr.mxu0 0.0
    %158 = vmatpush1.msra.mxu0 %v90
    %159 = vmatprep.subr.mxu0 0.0
    %160 = vmatpush1.msra.mxu0 %v91
    %161 = vmatprep.subr.mxu0 0.0
    %162 = vmatpush1.msra.mxu0 %v92
    %163 = vmatprep.subr.mxu0 0.0
    %164 = vmatpush1.msra.mxu0 %v93
    %165 = vmatprep.mubr.f32.mxu0 %v61
    %166 = vmatmul.mubr.f32.gmra.mrb[0].mxu0 %v60
    %v167 = vpop.f32.mrb[0].mxu0
    %v168 = vadd.f32 %v99, %v167
    %v169 = vpop.f32.mrb[0].mxu0
    %170 = vdwg.mxu0
    %v171 = vld [vmem:[#allocation7] sm:$0xff]
    %v172 = vld [vmem:[#allocation7 + $0x8] sm:$0xff]
    %v173 = vld [vmem:[#allocation7 + $0x10] sm:$0xff]
    %v174 = vld [vmem:[#allocation7 + $0x18] sm:$0xff]
    %v175 = vld [vmem:[#allocation7 + $0x20] sm:$0xff]
    %v176 = vld [vmem:[#allocation7 + $0x28] sm:$0xff]
    %v177 = vld [vmem:[#allocation7 + $0x30] sm:$0xff]
    %v178 = vld [vmem:[#allocation7 + $0x38] sm:$0xff]
    %v179 = vld [vmem:[#allocation7 + $0x40] sm:$0xff]
    %v180 = vld [vmem:[#allocation7 + $0x48] sm:$0xff]
    %v181 = vld [vmem:[#allocation7 + $0x50] sm:$0xff]
    %v182 = vld [vmem:[#allocation7 + $0x58] sm:$0xff]
    %v183 = vld [vmem:[#allocation7 + $0x60] sm:$0xff]
    %v184 = vld [vmem:[#allocation7 + $0x68] sm:$0xff]
    %v185 = vld [vmem:[#allocation7 + $0x70] sm:$0xff]
    %v186 = vld [vmem:[#allocation7 + $0x78] sm:$0xff]
    %v187 = vld [vmem:[%s4] sm:$0x1]
    %v189 = vlaneseq
    %v190 = vshrl.u32 %v189, 7
    %v191 = vsub.s32 0, %v190
    %v192 = vrot.slane %v187, %v191
    %194 = vmatprep.subr.mxu0 0.0
    %195 = vmatpush1.msra.mxu0 %v171
    %196 = vmatprep.subr.mxu0 0.0
    %197 = vmatpush1.msra.mxu0 %v172
    %198 = vmatprep.subr.mxu0 0.0
    %199 = vmatpush1.msra.mxu0 %v173
    %200 = vmatprep.subr.mxu0 0.0
    %201 = vmatpush1.msra.mxu0 %v174
    %202 = vmatprep.subr.mxu0 0.0
    %203 = vmatpush1.msra.mxu0 %v175
    %204 = vmatprep.subr.mxu0 0.0
    %205 = vmatpush1.msra.mxu0 %v176
    %206 = vmatprep.subr.mxu0 0.0
    %207 = vmatpush1.msra.mxu0 %v177
    %208 = vmatprep.subr.mxu0 0.0
    %209 = vmatpush1.msra.mxu0 %v178
    %210 = vmatprep.subr.mxu0 0.0
    %211 = vmatpush1.msra.mxu0 %v179
    %212 = vmatprep.subr.mxu0 0.0
    %213 = vmatpush1.msra.mxu0 %v180
    %214 = vmatprep.subr.mxu0 0.0
    %215 = vmatpush1.msra.mxu0 %v181
    %216 = vmatprep.subr.mxu0 0.0
    %217 = vmatpush1.msra.mxu0 %v182
    %218 = vmatprep.subr.mxu0 0.0
    %219 = vmatpush1.msra.mxu0 %v183
    %220 = vmatprep.subr.mxu0 0.0
    %221 = vmatpush1.msra.mxu0 %v184
    %222 = vmatprep.subr.mxu0 0.0
    %223 = vmatpush1.msra.mxu0 %v185
    %224 = vmatprep.subr.mxu0 0.0
    %225 = vmatpush1.msra.mxu0 %v186
    %226 = vmatprep.subr.mxu0 0.0
    %227 = vmatpush1.msra.mxu0 0.0
    %228 = vmatprep.subr.mxu0 0.0
    %229 = vmatpush1.msra.mxu0 0.0
    %230 = vmatprep.subr.mxu0 0.0
    %231 = vmatpush1.msra.mxu0 0.0
    %232 = vmatprep.subr.mxu0 0.0
    %233 = vmatpush1.msra.mxu0 0.0
    %234 = vmatprep.subr.mxu0 0.0
    %235 = vmatpush1.msra.mxu0 0.0
    %236 = vmatprep.subr.mxu0 0.0
    %237 = vmatpush1.msra.mxu0 0.0
    %238 = vmatprep.subr.mxu0 0.0
    %239 = vmatpush1.msra.mxu0 0.0
    %240 = vmatprep.subr.mxu0 0.0
    %241 = vmatpush1.msra.mxu0 0.0
    %242 = vmatprep.subr.mxu0 0.0
    %243 = vmatpush1.msra.mxu0 0.0
    %244 = vmatprep.subr.mxu0 0.0
    %245 = vmatpush1.msra.mxu0 0.0
    %246 = vmatprep.subr.mxu0 0.0
    %247 = vmatpush1.msra.mxu0 0.0
    %248 = vmatprep.subr.mxu0 0.0
    %249 = vmatpush1.msra.mxu0 0.0
    %250 = vmatprep.subr.mxu0 0.0
    %251 = vmatpush1.msra.mxu0 0.0
    %252 = vmatprep.subr.mxu0 0.0
    %253 = vmatpush1.msra.mxu0 0.0
    %254 = vmatprep.subr.mxu0 0.0
    %255 = vmatpush1.msra.mxu0 0.0
    %256 = vmatprep.subr.mxu0 0.0
    %257 = vmatpush1.msra.mxu0 0.0
    %258 = vmatprep.mubr.f32.mxu0 0.0
    %259 = vmatmul.mubr.f32.gmra.mrb[0].mxu0 %v168
    %v260 = vpop.f32.mrb[0].mxu0
    %v261 = vadd.f32 %v192, %v260
    %v262 = vpop.f32.mrb[0].mxu0
    %263 = vdwg.mxu0
    %264 = vst [vmem:[#allocation8] sm:$0xff] %v261
    // Predicated region
    $region34: #{tpu_custom_call.1} parent=1 // pred_check
      _
    $region35: #{tpu_custom_call.1} parent=1 // pred_check_branch
      %266 = sbr.rel (0) target = $region37
    $region36: #{tpu_custom_call.1} parent=1 // pred_region
      %s268 = ssub.s32 128, 128
      %269 = vsyncadd [#allocation4], %s268
      %s271 = sshll.u32 [#allocation8], 4
      %s272 = int_to_ptr.vmem [resolvable:$true] %s271
      %274 = dma.vmem_to_hbm [thread:$0]  %s272, 128, %s5, [#allocation4]
    $region37: #{tpu_custom_call.1} parent=1 // pred_fallthru
      _
    // Predicated region
    $region38: #{tpu_custom_call.1} parent=1 // pred_check
      _
    $region39: #{tpu_custom_call.1} parent=1 // pred_check_branch
      %276 = sbr.rel (0) target = $region41
    $region40: #{tpu_custom_call.1} parent=1 // pred_region
      %277 = dma.done [#allocation4], 128
    $region41: #{tpu_custom_call.1} parent=1 // pred_fallthru
      _
    %278 = vsyncpa [#allocation3], 1
    %279 = vsyncpa [#allocation6], 1
    %280 = vsyncpa [#allocation4], 1

</llo_original>
